<compile_context>
chip_gen: v6e
topology: v6e:2x2x1
jax: 0.10.0
libtpu: 0.0.40
codegen_flags: <defaults>
</compile_context>

<pallas_src>
import jax
import jax.numpy as jnp
from jax.experimental import pallas as pl
from jax.experimental.pallas import tpu as pltpu

_LANE = 128
_TARGET_BLOCK_BYTES = 2 * 1024 * 1024  # ~2 MiB image bytes per grid step


def _normalize_kernel(x_ref, sb_ref, o_ref):
    # x_ref : (block_rows, block_hw)   image tile (rows = flattened N*C)
    # sb_ref: (2, block_rows, 1) f32   [0] = 1/std, [1] = -mean/std per row
    # o_ref : (block_rows, block_hw)
    scale = sb_ref[0]          # (block_rows, 1) -> broadcasts across lanes
    bias = sb_ref[1]           # (block_rows, 1)
    o_ref[...] = (x_ref[...] * scale + bias).astype(o_ref.dtype)


def _sublane_multiple(itemsize):
    # Native sublane packing: f32 -> 8, bf16 -> 16, int8/fp8 -> 32.
    return {4: 8, 2: 16, 1: 32}.get(itemsize, 8)


def _choose_blocks(R, HW, itemsize, target_bytes=_TARGET_BLOCK_BYTES):
    """Pick (block_rows, block_hw) giving ~target_bytes per image tile.

    HW is already a multiple of 128. block_rows is a multiple of the sublane
    packing factor (or the full R); block_hw is a multiple of 128 (or the
    full HW) — satisfying the TPU (8, 128) BlockSpec constraint.
    """
    sub = _sublane_multiple(itemsize)
    row_bytes = HW * itemsize
    if sub * row_bytes <= target_bytes:
        # Full-HW row strips fit: keep lanes at full HW (contiguous DMA) and
        # grow the row count toward the byte target.
        block_hw = HW
        rows = max(sub, (target_bytes // row_bytes) // sub * sub)
        block_rows = R if rows >= R else rows
    else:
        # HW alone is huge: thin row strip, cap the lane extent.
        block_rows = R if R < sub else sub
        lanes = max(_LANE,
                    (target_bytes // (block_rows * itemsize)) // _LANE * _LANE)
        block_hw = min(HW, lanes)
    return block_rows, block_hw


def normalization_forward(img, mean, std):
    """(img - mean.view(-1,1,1)) / std.view(-1,1,1) for NCHW `img`."""
    N, C, H, W = img.shape
    HW = H * W
    R = N * C
    itemsize = jnp.dtype(img.dtype).itemsize

    x2 = img.reshape(R, HW)

    # Pad the lane (HW) axis to a multiple of 128 only when needed, so blocks
    # are always lane-dense; the pad region is sliced away afterwards.
    HW_pad = ((HW + _LANE - 1) // _LANE) * _LANE
    if HW_pad != HW:
        x2 = jnp.pad(x2, ((0, 0), (0, HW_pad - HW)))

    block_rows, block_hw = _choose_blocks(R, HW_pad, itemsize)
    grid = (pl.cdiv(R, block_rows), pl.cdiv(HW_pad, block_hw))

    # Precompute fused per-row (= per batch*channel) params in f32:
    #   out = x * (1/std) + (-mean/std)
    mean_f32 = mean.astype(jnp.float32).reshape(C)
    std_f32 = std.astype(jnp.float32).reshape(C)
    scale_c = 1.0 / std_f32
    bias_c = -mean_f32 * scale_c
    params = jnp.stack([jnp.tile(scale_c, N), jnp.tile(bias_c, N)])
    params = params.reshape(2, R, 1)

    out2 = pl.pallas_call(
        _normalize_kernel,
        out_shape=jax.ShapeDtypeStruct((R, HW_pad), img.dtype),
        grid=grid,
        in_specs=[
            pl.BlockSpec((block_rows, block_hw), lambda i, j: (i, j)),
            pl.BlockSpec((2, block_rows, 1), lambda i, j: (0, i, 0)),
        ],
        out_specs=pl.BlockSpec((block_rows, block_hw), lambda i, j: (i, j)),
        compiler_params=pltpu.CompilerParams(
            dimension_semantics=("parallel", "parallel"),
        ),
    )(x2, params)

    if HW_pad != HW:
        out2 = out2[:, :HW]
    return out2.reshape(N, C, H, W)


def _check(N, C, H, W, key):
    k_img, k_mean, k_std = jax.random.split(key, 3)
    img = jax.random.normal(k_img, (N, C, H, W), dtype=jnp.float32)
    mean = jax.random.normal(k_mean, (C,), dtype=jnp.float32) * 0.5
    std = jax.random.uniform(k_std, (C,), dtype=jnp.float32,
                             minval=0.5, maxval=1.5)

    out = normalization_forward(img, mean, std)
    jax.block_until_ready(out)

    ref = (img - mean.reshape(1, C, 1, 1)) / std.reshape(1, C, 1, 1)
    assert out.shape == (N, C, H, W)
    assert jnp.allclose(out, ref, atol=1e-5, rtol=1e-5)


if __name__ == "__main__":
    key = jax.random.PRNGKey(0)
    k0, k1 = jax.random.split(key)

    # primary small case (128-divisible spatial extent)
    _check(2, 4, 16, 16, k0)
    # odd spatial extent: exercises the lane-padding + ragged/full-dim path
    _check(3, 3, 10, 10, k1)

    print("KERNEL_OK")
</pallas_src>

<mosaic_0001>
module attributes {stable_mosaic.version = 11 : i64} {
  func.func @_normalize_kernel(%arg0: i32, %arg1: i32, %arg2: memref<8x256xf32, #tpu.memory_space<vmem>>, %arg3: memref<2x8x1xf32, #tpu.memory_space<vmem>>, %arg4: memref<8x256xf32, #tpu.memory_space<vmem>>) attributes {dimension_semantics = [#tpu.dimension_semantics<parallel>, #tpu.dimension_semantics<parallel>], iteration_bounds = array<i64: 1, 1>, scalar_prefetch = 0 : i64, scratch_operands = 0 : i64, tpu.core_type = #tpu.core_type<tc>, window_params = [{transform_indices = @transform_0, window_bounds = array<i64: 8, 256>}, {transform_indices = @transform_1, window_bounds = array<i64: 2, 8, 1>}, {transform_indices = @transform_2, window_bounds = array<i64: 8, 256>}]} {
    %c0 = arith.constant 0 : index
    %c0_0 = arith.constant 0 : index
    %c0_1 = arith.constant 0 : index
    %0 = vector.load %arg3[%c0, %c0_0, %c0_1] : memref<2x8x1xf32, #tpu.memory_space<vmem>>, vector<1x8x1xf32>
    %1 = vector.shape_cast %0 : vector<1x8x1xf32> to vector<8x1xf32>
    %c1 = arith.constant 1 : index
    %c0_2 = arith.constant 0 : index
    %c0_3 = arith.constant 0 : index
    %2 = vector.load %arg3[%c1, %c0_2, %c0_3] : memref<2x8x1xf32, #tpu.memory_space<vmem>>, vector<1x8x1xf32>
    %3 = vector.shape_cast %2 : vector<1x8x1xf32> to vector<8x1xf32>
    %c0_4 = arith.constant 0 : index
    %c0_5 = arith.constant 0 : index
    %4 = vector.load %arg2[%c0_4, %c0_5] : memref<8x256xf32, #tpu.memory_space<vmem>>, vector<8x256xf32>
    %5 = vector.broadcast %1 : vector<8x1xf32> to vector<8x256xf32>
    %6 = arith.mulf %4, %5 : vector<8x256xf32>
    %7 = vector.broadcast %3 : vector<8x1xf32> to vector<8x256xf32>
    %8 = arith.addf %6, %7 : vector<8x256xf32>
    %c0_6 = arith.constant 0 : index
    %c0_7 = arith.constant 0 : index
    %9 = vector.load %arg4[%c0_6, %c0_7] : memref<8x256xf32, #tpu.memory_space<vmem>>, vector<8x256xf32>
    tpu.vector_store %arg4[%c0_6, %c0_7], %8 {strides = array<i32>} : memref<8x256xf32, #tpu.memory_space<vmem>>, vector<8x256xf32>,
    return
  }
  func.func @transform_0(%arg0: i32, %arg1: i32) -> (i32, i32) {
    %c0_i32 = arith.constant 0 : i32
    return %arg0, %arg1 : i32, i32
  }
  func.func @transform_1(%arg0: i32, %arg1: i32) -> (i32, i32, i32) {
    %c0_i32 = arith.constant 0 : i32
    %c0_i32_0 = arith.constant 0 : i32
    %c0_i32_1 = arith.constant 0 : i32
    return %c0_i32, %arg0, %c0_i32_0 : i32, i32, i32
  }
  func.func @transform_2(%arg0: i32, %arg1: i32) -> (i32, i32) {
    %c0_i32 = arith.constant 0 : i32
    return %arg0, %arg1 : i32, i32
  }
}

</mosaic_0001>

<llo_original>
// kernel: tpu_custom_call.1
$region0: #{tpu_custom_call.1}
  #allocation0 [shape = 'u32[]', space=smem, size = 0x4, offset = 0x4, fixed_abs, tag = 'smem constant byte address 0x4 - core index']
  #allocation1 [shape = 'u32[144,128]{1,0:T(1,128)}', space=vmem, size = 0x12000, scoped, tag = 'internal scratch']
  %s0 = inlined_call_operand.vmem [shape: f32[8,256], index: 0, kind: input, shape index: {}]
  %s1 = inlined_call_operand.vmem [shape: f32[2,8,1], index: 1, kind: input, shape index: {}]
  %s2 = inlined_call_operand.hbm [shape: f32[8,256], index: 2, kind: output, shape index: {}]
  %s3 = sld [smem:[#allocation0]]
  $region18: #{tpu_custom_call.1} parent=0
    _
  %s5 = ssub.s32 1, %s3
  %s6 = scalar_select 0, %s5, %s3
  $region1: #{tpu_custom_call.1} parent=0
    #allocation2 [shape = 'u8[8192]{0}', space=vmem, size = 0x2000, scoped, tag = 'output window, operand 0, single buffered']
    #allocation3 [shape = 's32[1]{0}', space=sflag, size = 0x4, scoped, tag = 'scoped memory for tpu_custom_call.1']
    %7 = vsyncpa [#allocation3], 0
    // Predicated region
    $region2: #{tpu_custom_call.1} parent=1 // pred_check
      _
    $region3: #{tpu_custom_call.1} parent=1 // pred_check_branch
      %9 = sbr.rel (0) target = $region5
    $region4: #{tpu_custom_call.1} parent=1 // pred_region
      _
    $region5: #{tpu_custom_call.1} parent=1 // pred_fallthru
      _
    // Predicated region
    $region6: #{tpu_custom_call.1} parent=1 // pred_check
      _
    $region7: #{tpu_custom_call.1} parent=1 // pred_check_branch
      %11 = sbr.rel (0) target = $region9
    $region8: #{tpu_custom_call.1} parent=1 // pred_region
      _
    $region9: #{tpu_custom_call.1} parent=1 // pred_fallthru
      _
    %v12 = vld [vmem:[%s1] sm:$0xff]
    %s13 = scalar_lea.vmem %s1, 8
    %v14 = vld [vmem:[%s13] sm:$0xff]
    %v15 = vld [vmem:[%s0] sm:$0xff]
    %v16 = vld [vmem:[%s0 + $0x8] sm:$0xff]
    %18 = vset.pattern.permute.xlu0 0
    %19 = vperm.xlu0 %18, %v12
    %v20 = vpop.permute.xlu0 %19
    %v22 = vmul.f32 %v15, %v20
    %v23 = vmul.f32 %v16, %v20
    %25 = vset.pattern.permute.xlu0 0
    %26 = vperm.xlu0 %25, %v14
    %v27 = vpop.permute.xlu0 %26
    %v29 = vadd.f32 %v22, %v27
    %v30 = vadd.f32 %v23, %v27
    %31 = vst [vmem:[#allocation2] sm:$0xff] %v29
    %32 = vst [vmem:[#allocation2 + $0x8] sm:$0xff] %v30
    // Predicated region
    $region10: #{tpu_custom_call.1} parent=1 // pred_check
      _
    $region11: #{tpu_custom_call.1} parent=1 // pred_check_branch
      %34 = sbr.rel (0) target = $region13
    $region12: #{tpu_custom_call.1} parent=1 // pred_region
      %s36 = ssub.s32 256, 256
      %37 = vsyncadd [#allocation3], %s36
      %s39 = sshll.u32 [#allocation2], 4
      %s40 = int_to_ptr.vmem [resolvable:$true] %s39
      %42 = dma.vmem_to_hbm [thread:$0]  %s40, 256, %s2, [#allocation3]
    $region13: #{tpu_custom_call.1} parent=1 // pred_fallthru
      _
    // Predicated region
    $region14: #{tpu_custom_call.1} parent=1 // pred_check
      _
    $region15: #{tpu_custom_call.1} parent=1 // pred_check_branch
      %44 = sbr.rel (0) target = $region17
    $region16: #{tpu_custom_call.1} parent=1 // pred_region
      %45 = dma.done [#allocation3], 256
    $region17: #{tpu_custom_call.1} parent=1 // pred_fallthru
      _
    %46 = vsyncpa [#allocation3], 1

</llo_original>
